<compile_context>
chip_gen: v7x
topology: tpu7x:2x2x1
jax: 0.10.0
libtpu: 0.0.40
codegen_flags: <defaults>
</compile_context>

<pallas_src>
import functools

import jax
import jax.numpy as jnp
from jax import lax
from jax.experimental import pallas as pl
from jax.experimental.pallas import tpu as pltpu


def _round_up(x, m):
    return ((x + m - 1) // m) * m


def _cdiv(a, b):
    return -(-a // b)


# ----------------------------------------------------------------------------
# MSE kernel: tiled, pipelined sum((x - y)^2) over the flattened signal,
# reshaped to (M, 1024) so every block is sublane/lane dense.
# ----------------------------------------------------------------------------
def _sumsq_kernel(x_ref, y_ref, o_ref):
    @pl.when(pl.program_id(0) == 0)
    def _init():
        o_ref[...] = jnp.zeros_like(o_ref)

    d = x_ref[...] - y_ref[...]
    o_ref[...] += jnp.sum(d * d)


def mse_sum_of_squares(x, y):
    total = x.size
    cols = 1024
    m = _cdiv(total, cols)
    bm = min(512, _round_up(m, 8))
    m_pad = _round_up(m, bm)
    pad = m_pad * cols - total                 # zero padding contributes 0
    xp = jnp.pad(x.reshape(-1), (0, pad)).reshape(m_pad, cols)
    yp = jnp.pad(y.reshape(-1), (0, pad)).reshape(m_pad, cols)
    out = pl.pallas_call(
        _sumsq_kernel,
        out_shape=jax.ShapeDtypeStruct((1, 1), jnp.float32),
        grid_spec=pltpu.PrefetchScalarGridSpec(
            num_scalar_prefetch=0,
            grid=(m_pad // bm,),
            in_specs=[
                pl.BlockSpec((bm, cols), lambda i: (i, 0)),
                pl.BlockSpec((bm, cols), lambda i: (i, 0)),
            ],
            out_specs=pl.BlockSpec((1, 1), lambda i: (0, 0)),
        ),
        compiler_params=pltpu.CompilerParams(
            dimension_semantics=("arbitrary",)),
    )(xp, yp)
    return out[0, 0]


# ----------------------------------------------------------------------------
# Per-scale spectral kernel.
# Grid = (signal row r [parallel], frame tile ft [parallel]).
# Inputs per cell:
#   x_main/y_main : (1, tr, hop)   f32  hop-rows ft*tr .. ft*tr+tr
#   x_tail/y_tail : (1, 8, hop)    f32  the 8 rows after the main slab
#   basis         : (n_freq_tiles, n_fft, 256) bf16, resident (constant index)
#                   lanes [0:128)=cos, [128:256)=sin, window/norm folded in,
#                   freqs beyond n_freq zeroed (contribute 0).
# Output per cell: (1, 1, 128) f32
#   lane 0 = sum((|X|-|Y|)^2), lane 1 = sum(|X|^2), lane 2 = sum(|log-diff|)
# ----------------------------------------------------------------------------
def _spectral_scale_kernel(x_main_ref, x_tail_ref, y_main_ref, y_tail_ref,
                           basis_ref, o_ref, fr_ref, acc_ref, *,
                           tr, hop, n_fft, n_freq_tiles, n_frames):
    # ---- assemble the (2*tr, n_fft) bf16 frame matrix once per cell --------
    # overlap = 0.75  ->  frame f = hop-rows [f, f+1, f+2, f+3] concatenated.
    xs = jnp.concatenate([x_main_ref[0], x_tail_ref[0]], axis=0)  # (tr+8, hop)
    ys = jnp.concatenate([y_main_ref[0], y_tail_ref[0]], axis=0)
    fx = jnp.concatenate([xs[q:q + tr, :] for q in range(4)], axis=1)
    fy = jnp.concatenate([ys[q:q + tr, :] for q in range(4)], axis=1)
    fr_ref[0:tr, :] = fx.astype(jnp.bfloat16)
    fr_ref[tr:, :] = fy.astype(jnp.bfloat16)

    acc_ref[...] = jnp.zeros_like(acc_ref)

    # ---- frequency tiles: one merged (2*tr, n_fft)x(n_fft, 256) matmul each,
    #      elementwise accumulation only (reductions deferred) ---------------
    for j in range(n_freq_tiles):
        prod = jnp.dot(fr_ref[...], basis_ref[j],
                       preferred_element_type=jnp.float32)       # (2*tr, 256)
        xr = prod[:tr, :128]
        xi = prod[:tr, 128:]
        yr = prod[tr:, :128]
        yi = prod[tr:, 128:]
        px = xr * xr + xi * xi                                   # |X|^2
        py = yr * yr + yi * yi
        sx = jnp.sqrt(px)                                        # |X|
        sy = jnp.sqrt(py)
        d = sx - sy
        acc_ref[0] += d * d
        acc_ref[1] += px
        acc_ref[2] += jnp.abs(jnp.log(sx + 1e-7) - jnp.log(sy + 1e-7))

    # ---- mask padded frames, reduce once, pack into 3 output lanes ---------
    ft = pl.program_id(1)
    row = lax.broadcasted_iota(jnp.int32, (tr, 128), 0)
    mask = ((ft * tr + row) < n_frames).astype(jnp.float32)
    ssd = jnp.sum(acc_ref[0] * mask)
    ssx = jnp.sum(acc_ref[1] * mask)
    slg = jnp.sum(acc_ref[2] * mask)
    lane = lax.broadcasted_iota(jnp.int32, o_ref.shape, 2)
    o_ref[...] = jnp.where(lane == 0, ssd,
                           jnp.where(lane == 1, ssx,
                                     jnp.where(lane == 2, slg, 0.0)))


def spectral_scale_sums(x_sig, y_sig, basis, tr, n_frames):
    N, rows_pad, hop = x_sig.shape
    n_freq_tiles, n_fft, _ = basis.shape
    n_ft = (rows_pad - 8) // tr

    kernel = functools.partial(
        _spectral_scale_kernel, tr=tr, hop=hop, n_fft=n_fft,
        n_freq_tiles=n_freq_tiles, n_frames=n_frames)

    return pl.pallas_call(
        kernel,
        out_shape=jax.ShapeDtypeStruct((N * n_ft, 1, 128), jnp.float32),
        grid_spec=pltpu.PrefetchScalarGridSpec(
            num_scalar_prefetch=0,
            grid=(N, n_ft),
            in_specs=[
                pl.BlockSpec((1, tr, hop), lambda r, f: (r, f, 0)),
                pl.BlockSpec((1, 8, hop),
                             lambda r, f: (r, (f + 1) * tr // 8, 0)),
                pl.BlockSpec((1, tr, hop), lambda r, f: (r, f, 0)),
                pl.BlockSpec((1, 8, hop),
                             lambda r, f: (r, (f + 1) * tr // 8, 0)),
                # Resident basis: constant block index -> fetched once.
                pl.BlockSpec((n_freq_tiles, n_fft, 256),
                             lambda r, f: (0, 0, 0)),
            ],
            out_specs=pl.BlockSpec((1, 1, 128),
                                   lambda r, f: (r * n_ft + f, 0, 0)),
            scratch_shapes=[
                pltpu.VMEM((2 * tr, n_fft), jnp.bfloat16),   # frame matrix
                pltpu.VMEM((3, tr, 128), jnp.float32),       # deferred sums
            ],
        ),
        compiler_params=pltpu.CompilerParams(
            dimension_semantics=("parallel", "parallel"),
            vmem_limit_bytes=48 * 1024 * 1024),
    )(x_sig, x_sig, y_sig, y_sig, basis)


# ----------------------------------------------------------------------------
# JAX glue reproducing torch.stft(center=True, pad_mode='reflect',
# hann_window(periodic), normalized=True, onesided=True) + CombinedLoss.
# ----------------------------------------------------------------------------
def _prep_scale(sig2d, n_fft, hop, n_ft, tr):
    """Reflect-pad and reshape to (N, n_ft*tr + 8, hop) hop-rows (no frame
    duplication; padding rows beyond the valid frames are masked in-kernel)."""
    pad = n_fft // 2
    padded = jnp.pad(sig2d, ((0, 0), (pad, pad)), mode="reflect")
    N, L = padded.shape
    rows = n_ft * tr + 8
    padded = jnp.pad(padded, ((0, 0), (0, rows * hop - L)))
    return padded.reshape(N, rows, hop)


def _dft_basis_windowed(n_fft, dtype=jnp.bfloat16):
    """hann(periodic) * n_fft**-0.5 folded into the DFT basis, laid out as
    (n_freq_tiles, n_fft, 256): lanes [0:128)=cos, [128:256)=sin."""
    n_freq = n_fft // 2 + 1
    n_freq_tiles = _cdiv(n_freq, 128)
    n_freq_pad = n_freq_tiles * 128

    n = jnp.arange(n_fft, dtype=jnp.float32)
    win = (0.5 - 0.5 * jnp.cos(2.0 * jnp.pi * n / n_fft)) / jnp.sqrt(
        jnp.float32(n_fft))

    ni = jnp.arange(n_fft, dtype=jnp.int32)
    fi = jnp.arange(n_freq_pad, dtype=jnp.int32)
    k = (ni[:, None] * fi[None, :]) % n_fft          # exact phase index
    ang = (2.0 * jnp.pi / n_fft) * k.astype(jnp.float32)
    valid = (fi < n_freq).astype(jnp.float32)[None, :]

    cosm = jnp.cos(ang) * valid * win[:, None]       # (n_fft, n_freq_pad)
    sinm = jnp.sin(ang) * valid * win[:, None]       # sign irrelevant for |.|
    cosm = cosm.reshape(n_fft, n_freq_tiles, 128).transpose(1, 0, 2)
    sinm = sinm.reshape(n_fft, n_freq_tiles, 128).transpose(1, 0, 2)
    basis = jnp.concatenate([cosm, sinm], axis=2)    # (tiles, n_fft, 256)
    return basis.astype(dtype), n_freq


def combined_loss(output, target, mse_weight=1.0, spectral_weight=0.1,
                  scales=(2048, 1024, 512, 256, 128), overlap=0.75):
    b, c, t = output.shape
    N = b * c
    x = output.reshape(N, t).astype(jnp.float32)
    y = target.reshape(N, t).astype(jnp.float32)

    # --- MSE -------------------------------------------------------------
    mse = mse_sum_of_squares(x, y) / jnp.float32(b * c * t)

    # --- multi-scale spectral distance -----------------------------------
    lin = jnp.float32(0.0)
    logd = jnp.float32(0.0)
    for s in scales:
        hop = int(s * (1.0 - overlap))
        assert s == 4 * hop, "in-kernel framing assumes overlap = 0.75"
        n_frames = 1 + t // hop

        # Frame-tile sizing: bounded VMEM on v7x (64 MiB), >=2 parallel grid
        # cells for the megacore, tr multiple of 16 for bf16 sublane packing.
        tr_target = max(16, min(1024, (1 << 19) // s))
        n_ft = max(1, _cdiv(n_frames, tr_target))
        if N == 1 and n_frames >= 32:
            n_ft = max(n_ft, 2)
        tr = _round_up(_cdiv(n_frames, n_ft), 16)

        x_sig = _prep_scale(x, s, hop, n_ft, tr)
        y_sig = _prep_scale(y, s, hop, n_ft, tr)
        basis, n_freq = _dft_basis_windowed(s)

        part = spectral_scale_sums(x_sig, y_sig, basis, tr, n_frames)
        ssd = jnp.sum(part[:, 0, 0])
        ssx = jnp.sum(part[:, 0, 1])
        slg = jnp.sum(part[:, 0, 2])

        # lin_distance = norm(X - Y) / norm(X), X = output STFT (global norm).
        lin = lin + jnp.sqrt(ssd) / jnp.sqrt(ssx)
        numel = N * n_freq * n_frames
        logd = logd + slg / jnp.float32(numel)

    return mse_weight * mse + spectral_weight * (lin + logd)


if __name__ == "__main__":
    # (B, C, T) audio; T must exceed the largest scale (2048) so the reflect
    # padding / STFT framing is valid.
    B, C, T = 2, 1, 4096
    key = jax.random.PRNGKey(0)
    k1, k2 = jax.random.split(key)
    output = jax.random.normal(k1, (B, C, T), dtype=jnp.float32)
    target = output + 0.1 * jax.random.normal(k2, (B, C, T), dtype=jnp.float32)

    loss = combined_loss(output, target)
    loss = jax.block_until_ready(loss)
    assert jnp.isfinite(loss), "loss is not finite"
    print("KERNEL_OK")
</pallas_src>

<mosaic_0001>
module attributes {stable_mosaic.version = 11 : i64} {
  func.func @_sumsq_kernel(%arg0: i32, %arg1: memref<8x1024xf32, #tpu.memory_space<vmem>>, %arg2: memref<8x1024xf32, #tpu.memory_space<vmem>>, %arg3: memref<1x1xf32, #tpu.memory_space<vmem>>) attributes {dimension_semantics = [#tpu.dimension_semantics<arbitrary>], iteration_bounds = array<i64: 1>, scalar_prefetch = 0 : i64, scratch_operands = 0 : i64, tpu.core_type = #tpu.core_type<tc>, window_params = [{transform_indices = @transform_0, window_bounds = array<i64: 8, 1024>}, {transform_indices = @transform_1, window_bounds = array<i64: 8, 1024>}, {pipeline_mode = #tpu.pipeline_mode<synchronous>, transform_indices = @transform_2, window_bounds = array<i64: 1, 1>}]} {
    %c0_i32 = arith.constant 0 : i32
    %0 = arith.cmpi eq, %arg0, %c0_i32 : i32
    %1 = arith.extui %0 : i1 to i32
    %c0_i32_0 = arith.constant 0 : i32
    %2 = arith.cmpi ne, %1, %c0_i32_0 : i32
    scf.if %2 {
      %cst_8 = arith.constant 0.000000e+00 : f32
      %15 = vector.broadcast %cst_8 : f32 to vector<1x1xf32>
      %c0_9 = arith.constant 0 : index
      %c0_10 = arith.constant 0 : index
      %16 = vector.load %arg3[%c0_9, %c0_10] : memref<1x1xf32, #tpu.memory_space<vmem>>, vector<1x1xf32>
      tpu.vector_store %arg3[%c0_9, %c0_10], %15 {strides = array<i32>} : memref<1x1xf32, #tpu.memory_space<vmem>>, vector<1x1xf32>,
    } else {
    }
    %c0 = arith.constant 0 : index
    %c0_1 = arith.constant 0 : index
    %3 = vector.load %arg1[%c0, %c0_1] : memref<8x1024xf32, #tpu.memory_space<vmem>>, vector<8x1024xf32>
    %c0_2 = arith.constant 0 : index
    %c0_3 = arith.constant 0 : index
    %4 = vector.load %arg2[%c0_2, %c0_3] : memref<8x1024xf32, #tpu.memory_space<vmem>>, vector<8x1024xf32>
    %5 = arith.subf %3, %4 : vector<8x1024xf32>
    %c0_4 = arith.constant 0 : index
    %c0_5 = arith.constant 0 : index
    %6 = vector.load %arg3[%c0_4, %c0_5] : memref<1x1xf32, #tpu.memory_space<vmem>>, vector<1x1xf32>
    %7 = arith.mulf %5, %5 : vector<8x1024xf32>
    %8 = vector.shape_cast %7 : vector<8x1024xf32> to vector<1x8x1024xf32>
    %cst = arith.constant dense<0.000000e+00> : vector<1xf32>
    %9 = vector.multi_reduction <add>, %8, %cst [1, 2] : vector<1x8x1024xf32> to vector<1xf32>
    %10 = vector.shape_cast %9 : vector<1xf32> to vector<1x1x1xf32>
    %11 = vector.extract %10[0, 0, 0] : f32 from vector<1x1x1xf32>
    %12 = vector.broadcast %11 : f32 to vector<1x1xf32>
    %13 = arith.addf %6, %12 : vector<1x1xf32>
    %c0_6 = arith.constant 0 : index
    %c0_7 = arith.constant 0 : index
    %14 = vector.load %arg3[%c0_6, %c0_7] : memref<1x1xf32, #tpu.memory_space<vmem>>, vector<1x1xf32>
    tpu.vector_store %arg3[%c0_6, %c0_7], %13 {strides = array<i32>} : memref<1x1xf32, #tpu.memory_space<vmem>>, vector<1x1xf32>,
    return
  }
  func.func @transform_0(%arg0: i32) -> (i32, i32) {
    %c0_i32 = arith.constant 0 : i32
    %c0_i32_0 = arith.constant 0 : i32
    return %arg0, %c0_i32 : i32, i32
  }
  func.func @transform_1(%arg0: i32) -> (i32, i32) {
    %c0_i32 = arith.constant 0 : i32
    %c0_i32_0 = arith.constant 0 : i32
    return %arg0, %c0_i32 : i32, i32
  }
  func.func @transform_2(%arg0: i32) -> (i32, i32) {
    %c0_i32 = arith.constant 0 : i32
    %c0_i32_0 = arith.constant 0 : i32
    %c0_i32_1 = arith.constant 0 : i32
    return %c0_i32, %c0_i32_0 : i32, i32
  }
}

</mosaic_0001>

<llo_original>
// kernel: tpu_custom_call.1
$region0: #{tpu_custom_call.1}
  #allocation0 [shape = 'u32[]', space=smem, size = 0x4, offset = 0x4, fixed_abs, tag = 'smem constant byte address 0x4 - core index']
  #allocation1 [shape = 'u32[144,128]{1,0:T(1,128)}', space=vmem, size = 0x12000, scoped, tag = 'internal scratch']
  %s0 = inlined_call_operand.hbm [shape: f32[8,1024], index: 0, kind: input, shape index: {}]
  %s1 = inlined_call_operand.hbm [shape: f32[8,1024], index: 1, kind: input, shape index: {}]
  %s2 = inlined_call_operand.hbm [shape: f32[1,1], index: 2, kind: output, shape index: {}]
  %s3 = sld [smem:[#allocation0]]
  $region30: #{tpu_custom_call.1} parent=0
    _
  %s5 = ssub.s32 1, %s3
  %s6 = scalar_select 0, %s5, %s3
  $region1: #{tpu_custom_call.1} parent=0
    #allocation2 [shape = 'u8[32768]{0}', space=vmem, size = 0x8000, scoped, tag = 'input window, operand 0, single buffered']
    #allocation3 [shape = 's32[1]{0}', space=sflag, size = 0x4, scoped, tag = 'scoped memory for tpu_custom_call.1']
    #allocation4 [shape = 's32[1]{0}', space=sflag, size = 0x4, scoped, tag = 'scoped memory for tpu_custom_call.1']
    #allocation5 [shape = 'u8[32768]{0}', space=vmem, size = 0x8000, scoped, tag = 'input window, operand 1, single buffered']
    #allocation6 [shape = 's32[1]{0}', space=sflag, size = 0x4, scoped, tag = 'scoped memory for tpu_custom_call.1']
    #allocation7 [shape = 'u8[512]{0}', space=vmem, size = 0x400, scoped, tag = 'output window, operand 0, single buffered']
    %7 = vsyncpa [#allocation3], 0
    %8 = vsyncpa [#allocation6], 0
    %9 = vsyncpa [#allocation4], 0
    // Predicated region
    $region2: #{tpu_custom_call.1} parent=1 // pred_check
      _
    $region3: #{tpu_custom_call.1} parent=1 // pred_check_branch
      %11 = sbr.rel (0) target = $region5
    $region4: #{tpu_custom_call.1} parent=1 // pred_region
      %s13 = ssub.s32 1024, 1024
      %14 = vsyncadd [#allocation3], %s13
      %s16 = sshll.u32 [#allocation2], 4
      %s17 = int_to_ptr.vmem [resolvable:$true] %s16
      %19 = dma.hbm_to_vmem [thread:$0]  %s0, 1024, %s17, [#allocation3]
    $region5: #{tpu_custom_call.1} parent=1 // pred_fallthru
      _
    // Predicated region
    $region6: #{tpu_custom_call.1} parent=1 // pred_check
      _
    $region7: #{tpu_custom_call.1} parent=1 // pred_check_branch
      %21 = sbr.rel (0) target = $region9
    $region8: #{tpu_custom_call.1} parent=1 // pred_region
      %s23 = ssub.s32 1024, 1024
      %24 = vsyncadd [#allocation6], %s23
      %s26 = sshll.u32 [#allocation5], 4
      %s27 = int_to_ptr.vmem [resolvable:$true] %s26
      %29 = dma.hbm_to_vmem [thread:$0]  %s1, 1024, %s27, [#allocation6]
    $region9: #{tpu_custom_call.1} parent=1 // pred_fallthru
      _
    // Predicated region
    $region10: #{tpu_custom_call.1} parent=1 // pred_check
      _
    $region11: #{tpu_custom_call.1} parent=1 // pred_check_branch
      %31 = sbr.rel (0) target = $region13
    $region12: #{tpu_custom_call.1} parent=1 // pred_region
      %32 = dma.done [#allocation3], 1024
    $region13: #{tpu_custom_call.1} parent=1 // pred_fallthru
      _
    // Predicated region
    $region14: #{tpu_custom_call.1} parent=1 // pred_check
      _
    $region15: #{tpu_custom_call.1} parent=1 // pred_check_branch
      %34 = sbr.rel (0) target = $region17
    $region16: #{tpu_custom_call.1} parent=1 // pred_region
      %35 = dma.done [#allocation6], 1024
    $region17: #{tpu_custom_call.1} parent=1 // pred_fallthru
      _
    %p36 = scmp.eq.s32.totalorder 0, 0
    // Predicated region
    $region18: #{tpu_custom_call.1} parent=1 // pred_check
      %p37 = pneg %p36
    $region19: #{tpu_custom_call.1} parent=1 // pred_check_branch
      %39 = sbr.rel (%p37) target = $region21
    $region20: #{tpu_custom_call.1} parent=1 // pred_region
      %vm40 = vcmask 0
      %41 = vst.msk [vmem:[#allocation7] sm:$0x1] %vm40, 0.0
    $region21: #{tpu_custom_call.1} parent=1 // pred_fallthru
      _
    %v42 = vld [vmem:[#allocation2] sm:$0xff]
    %v43 = vld [vmem:[#allocation2 + $0x8] sm:$0xff]
    %v44 = vld [vmem:[#allocation2 + $0x10] sm:$0xff]
    %v45 = vld [vmem:[#allocation2 + $0x18] sm:$0xff]
    %v46 = vld [vmem:[#allocation2 + $0x20] sm:$0xff]
    %v47 = vld [vmem:[#allocation2 + $0x28] sm:$0xff]
    %v48 = vld [vmem:[#allocation2 + $0x30] sm:$0xff]
    %v49 = vld [vmem:[#allocation2 + $0x38] sm:$0xff]
    %v50 = vld [vmem:[#allocation5] sm:$0xff]
    %v51 = vld [vmem:[#allocation5 + $0x8] sm:$0xff]
    %v52 = vld [vmem:[#allocation5 + $0x10] sm:$0xff]
    %v53 = vld [vmem:[#allocation5 + $0x18] sm:$0xff]
    %v54 = vld [vmem:[#allocation5 + $0x20] sm:$0xff]
    %v55 = vld [vmem:[#allocation5 + $0x28] sm:$0xff]
    %v56 = vld [vmem:[#allocation5 + $0x30] sm:$0xff]
    %v57 = vld [vmem:[#allocation5 + $0x38] sm:$0xff]
    %v58 = vsub.f32 %v42, %v50
    %v59 = vsub.f32 %v43, %v51
    %v60 = vsub.f32 %v44, %v52
    %v61 = vsub.f32 %v45, %v53
    %v62 = vsub.f32 %v46, %v54
    %v63 = vsub.f32 %v47, %v55
    %v64 = vsub.f32 %v48, %v56
    %v65 = vsub.f32 %v49, %v57
    %v66 = vld [vmem:[#allocation7] sm:$0x1]
    %v67 = vmul.f32 %v58, %v58
    %v68 = vmul.f32 %v59, %v59
    %v69 = vmul.f32 %v60, %v60
    %v70 = vmul.f32 %v61, %v61
    %v71 = vmul.f32 %v62, %v62
    %v72 = vmul.f32 %v63, %v63
    %v73 = vmul.f32 %v64, %v64
    %v74 = vmul.f32 %v65, %v65
    %v75 = vadd.f32 %v67, %v68
    %v76 = vadd.f32 %v75, %v69
    %v77 = vadd.f32 %v76, %v70
    %v78 = vadd.f32 %v77, %v71
    %v79 = vadd.f32 %v78, %v72
    %v80 = vadd.f32 %v79, %v73
    %v81 = vadd.f32 %v80, %v74
    %82 = vadd.xlane.f32.xlu0 %v81
    %v83 = vpop.xlane.xlu0 %82
    %v84 = vrot.slane %v83, 4
    %v85 = vadd.f32 %v83, %v84
    %v86 = vrot.slane %v85, 2
    %v87 = vadd.f32 %v85, %v86
    %v88 = vrot.slane %v87, 1
    %v89 = vadd.f32 %v87, %v88
    %s90 = vtos %v89
    %v91 = vstv %s90
    %v92 = vadd.f32 %v66, %v91
    %vm93 = vcmask 0
    %94 = vst.msk [vmem:[#allocation7] sm:$0x1] %vm93, %v92
    // Predicated region
    $region22: #{tpu_custom_call.1} parent=1 // pred_check
      _
    $region23: #{tpu_custom_call.1} parent=1 // pred_check_branch
      %96 = sbr.rel (0) target = $region25
    $region24: #{tpu_custom_call.1} parent=1 // pred_region
      %s98 = ssub.s32 16, 16
      %99 = vsyncadd [#allocation4], %s98
      %s101 = sshll.u32 [#allocation7], 4
      %s102 = int_to_ptr.vmem [resolvable:$true] %s101
      %104 = dma.vmem_to_hbm [thread:$0]  %s102, 16, %s2, [#allocation4]
    $region25: #{tpu_custom_call.1} parent=1 // pred_fallthru
      _
    // Predicated region
    $region26: #{tpu_custom_call.1} parent=1 // pred_check
      _
    $region27: #{tpu_custom_call.1} parent=1 // pred_check_branch
      %106 = sbr.rel (0) target = $region29
    $region28: #{tpu_custom_call.1} parent=1 // pred_region
      %107 = dma.done [#allocation4], 16
    $region29: #{tpu_custom_call.1} parent=1 // pred_fallthru
      _
    %108 = vsyncpa [#allocation3], 1
    %109 = vsyncpa [#allocation6], 1
    %110 = vsyncpa [#allocation4], 1

</llo_original>
